<compile_context>
chip_gen: v6e
topology: v6e:2x2x1
jax: 0.10.0
libtpu: 0.0.40
codegen_flags: <defaults>
</compile_context>

<pallas_src>
import functools

import jax
import jax.numpy as jnp
from jax.experimental import pallas as pl
from jax.experimental.pallas import tpu as pltpu

_LANES = 128
_SUBLANES = 8
_DEFAULT_BLOCK_ROWS = 4096  # (4096, 128) f32 tile = 2 MiB per input block.


def _round_up(x, m):
    return ((x + m - 1) // m) * m


def _default_num_cores():
    # v7x has 2 TensorCores per chip; give each TC half of the blocks via a
    # leading "parallel" grid axis.  On 1-TC chips (v5e/v6e) stay at 1.
    try:
        kind = jax.devices()[0].device_kind.lower()
    except Exception:
        return 1
    if "v7" in kind or "7x" in kind:
        return 2
    return 1


def _bce_ignore_kernel(x_ref, t_ref, sum_ref, cnt_ref, *,
                       ignore_index, rows, block_rows, steps_per_core,
                       total_blocks, has_padding_steps):
    c = pl.program_id(0)          # core index (parallel axis)
    i = pl.program_id(1)          # per-core step (arbitrary axis)
    gb = c * steps_per_core + i   # global block index (may point past the end)

    @pl.when(i == 0)
    def _init():
        sum_ref[...] = jnp.zeros_like(sum_ref)
        cnt_ref[...] = jnp.zeros_like(cnt_ref)

    x = x_ref[...].astype(jnp.float32)
    t = t_ref[...].astype(jnp.float32)

    valid = t != jnp.float32(ignore_index)

    # PyTorch BCELoss clamps both log terms at -100 before combining.
    log_x = jnp.maximum(jnp.log(x), jnp.float32(-100.0))
    log_1mx = jnp.maximum(jnp.log(1.0 - x), jnp.float32(-100.0))
    # pos == t*log(x) + (1-t)*log(1-x) == -bce ; negated once in the wrapper.
    # (Saves a subtract, a multiply and a per-element negate vs the direct form.)
    pos = log_1mx + t * (log_x - log_1mx)

    def _accumulate(vmask):
        p = jnp.where(vmask, pos, jnp.float32(0.0))
        v = vmask.astype(jnp.float32)
        # Fold (block_rows, 128) -> (8, 128) with VPU adds into the resident
        # per-core accumulator blocks; the single cross-lane reduce happens
        # in the wrapper.
        sum_ref[...] += p.reshape(-1, _SUBLANES, _LANES).sum(axis=0)
        cnt_ref[...] += v.reshape(-1, _SUBLANES, _LANES).sum(axis=0)

    ragged = (rows % block_rows) != 0  # static Python bool

    if ragged:
        # Hot path: all full blocks accumulate without the row-index mask.
        @pl.when(gb < total_blocks - 1)
        def _full():
            _accumulate(valid)

        # Only the last real block pays for the iota row mask.  Duplicate
        # steps (gb >= total_blocks, clamped index_map) are skipped entirely.
        @pl.when(gb == total_blocks - 1)
        def _last():
            row_ids = (jax.lax.broadcasted_iota(jnp.int32, x.shape, 0)
                       + gb * block_rows)
            _accumulate(jnp.logical_and(valid, row_ids < rows))
    else:
        if has_padding_steps:
            @pl.when(gb < total_blocks)
            def _in_range():
                _accumulate(valid)
        else:
            _accumulate(valid)


def bce_with_ignore_loss(inp, target, ignore_index=-1,
                         block_rows=_DEFAULT_BLOCK_ROWS, num_cores=None):
    """Mean BCE over elements where target != ignore_index. Returns f32 scalar.

    Returns nan if every element is ignored (same as PyTorch's empty mean).
    Inputs/targets are streamed in their native dtypes (bf16/f16/int8/... all
    fine); the ignore comparison is done in f32, exact for |ignore_index| <=
    2**24 (e.g. the usual -1 / -100 sentinels).
    """
    x = jnp.asarray(inp)
    t = jnp.asarray(target)
    if not jnp.issubdtype(x.dtype, jnp.floating):
        x = x.astype(jnp.float32)
    if t.dtype == jnp.bool_:
        t = t.astype(jnp.float32)   # 1-bit VMEM blocks are awkward; widen.
    x = x.reshape(-1)
    t = t.reshape(-1)
    n = x.shape[0]

    # Pad only when needed: to a multiple of 128 lanes and at least 8 rows.
    # Pad targets get ignore_index so they contribute to neither sum nor count.
    n_padded = max(_round_up(n, _LANES), _SUBLANES * _LANES)
    if n_padded != n:
        try:
            sentinel_ok = bool(t.dtype.type(ignore_index) == ignore_index)
        except (OverflowError, ValueError):
            sentinel_ok = False
        if not sentinel_ok:
            t = t.astype(jnp.float32)
        x = jnp.pad(x, (0, n_padded - n), constant_values=0.5)
        t = jnp.pad(t, (0, n_padded - n), constant_values=ignore_index)

    rows = n_padded // _LANES
    x2 = x.reshape(rows, _LANES)
    t2 = t.reshape(rows, _LANES)

    # Block rows: multiple of 8, never larger than the array (last block may
    # still overhang; it is masked in-kernel on the last step only).
    block_rows = max(_SUBLANES, _round_up(block_rows, _SUBLANES))
    br = block_rows if rows >= block_rows else (rows // _SUBLANES) * _SUBLANES

    total_blocks = pl.cdiv(rows, br)

    if num_cores is None:
        num_cores = _default_num_cores()
    num_cores = max(1, int(num_cores))
    if total_blocks < 2:
        num_cores = 1
    num_cores = min(num_cores, total_blocks)

    steps_per_core = pl.cdiv(total_blocks, num_cores)
    has_padding_steps = (steps_per_core * num_cores) != total_blocks
    last_block = total_blocks - 1

    def in_map(c, i):
        gb = c * steps_per_core + i
        if has_padding_steps:
            gb = jnp.minimum(gb, last_block)   # keep the DMA window in-bounds
        return (gb, 0)

    kernel = functools.partial(
        _bce_ignore_kernel,
        ignore_index=float(ignore_index),
        rows=rows,
        block_rows=br,
        steps_per_core=steps_per_core,
        total_blocks=total_blocks,
        has_padding_steps=has_padding_steps,
    )

    n_eff = rows * _LANES
    cost = pl.CostEstimate(
        flops=10 * n_eff,
        transcendentals=2 * n_eff,
        bytes_accessed=(x2.size * x2.dtype.itemsize
                        + t2.size * t2.dtype.itemsize
                        + 2 * num_cores * _SUBLANES * _LANES * 4),
    )

    sum_out, cnt_out = pl.pallas_call(
        kernel,
        out_shape=(
            jax.ShapeDtypeStruct((num_cores, _SUBLANES, _LANES), jnp.float32),
            jax.ShapeDtypeStruct((num_cores, _SUBLANES, _LANES), jnp.float32),
        ),
        grid_spec=pltpu.PrefetchScalarGridSpec(
            num_scalar_prefetch=0,
            grid=(num_cores, steps_per_core),
            in_specs=[
                pl.BlockSpec((br, _LANES), in_map),
                pl.BlockSpec((br, _LANES), in_map),
            ],
            out_specs=(
                pl.BlockSpec((None, _SUBLANES, _LANES), lambda c, i: (c, 0, 0)),
                pl.BlockSpec((None, _SUBLANES, _LANES), lambda c, i: (c, 0, 0)),
            ),
        ),
        compiler_params=pltpu.CompilerParams(
            dimension_semantics=("parallel", "arbitrary"),
        ),
        cost_estimate=cost,
    )(x2, t2)

    total = -jnp.sum(sum_out)   # undo the sign of the in-kernel `pos` rewrite
    count = jnp.sum(cnt_out)
    return total / count


def _reference(inp, target, ignore_index=-1):
    x = jnp.asarray(inp, jnp.float32).reshape(-1)
    t = jnp.asarray(target, jnp.float32).reshape(-1)
    valid = t != float(ignore_index)
    log_x = jnp.maximum(jnp.log(x), -100.0)
    log_1mx = jnp.maximum(jnp.log(1.0 - x), -100.0)
    bce = -(t * log_x + (1.0 - t) * log_1mx)
    return jnp.sum(jnp.where(valid, bce, 0.0)) / jnp.sum(valid.astype(jnp.float32))


if __name__ == "__main__":
    key = jax.random.PRNGKey(0)
    ks = jax.random.split(key, 12)

    # 1) NCHW-shaped probabilities (post-sigmoid), default params.
    B, C, H, W = 2, 4, 16, 16
    inp = jax.nn.sigmoid(jax.random.normal(ks[0], (B, C, H, W), jnp.float32))
    tgt = jax.random.bernoulli(ks[1], 0.5, (B, C, H, W)).astype(jnp.float32)
    tgt = jnp.where(jax.random.bernoulli(ks[2], 0.25, (B, C, H, W)),
                    jnp.float32(-1.0), tgt)
    loss = jax.block_until_ready(bce_with_ignore_loss(inp, tgt, ignore_index=-1))
    ref = _reference(inp, tgt, ignore_index=-1)
    assert jnp.allclose(loss, ref, rtol=1e-5, atol=1e-5), (loss, ref)

    # 2) Ragged flat size (not a multiple of 128) exercises the pad path.
    shp2 = (3, 5, 7)
    inp2 = jax.nn.sigmoid(jax.random.normal(ks[3], shp2, jnp.float32))
    tgt2 = jax.random.bernoulli(ks[4], 0.5, shp2).astype(jnp.float32)
    tgt2 = jnp.where(jax.random.bernoulli(ks[5], 0.25, shp2),
                     jnp.float32(-1.0), tgt2)
    loss2 = jax.block_until_ready(bce_with_ignore_loss(inp2, tgt2, ignore_index=-1))
    ref2 = _reference(inp2, tgt2, ignore_index=-1)
    assert jnp.allclose(loss2, ref2, rtol=1e-5, atol=1e-5), (loss2, ref2)

    # 3) Multi-block, forced 2-core split, odd block count (duplicate-step
    #    clamp) and ragged last block -- exercises every kernel branch.
    shp3 = (136, 128)
    inp3 = jax.nn.sigmoid(jax.random.normal(ks[6], shp3, jnp.float32))
    tgt3 = jax.random.bernoulli(ks[7], 0.5, shp3).astype(jnp.float32)
    tgt3 = jnp.where(jax.random.bernoulli(ks[8], 0.25, shp3),
                     jnp.float32(-1.0), tgt3)
    loss3 = jax.block_until_ready(
        bce_with_ignore_loss(inp3, tgt3, ignore_index=-1, block_rows=64,
                             num_cores=2))
    ref3 = _reference(inp3, tgt3, ignore_index=-1)
    assert jnp.allclose(loss3, ref3, rtol=1e-5, atol=1e-5), (loss3, ref3)

    # 4) Narrow dtypes streamed end-to-end (bf16 probabilities + bf16 labels).
    shp4 = (2, 4, 32, 16)
    inp4 = jax.nn.sigmoid(jax.random.normal(ks[9], shp4, jnp.float32)).astype(jnp.bfloat16)
    tgt4 = jax.random.bernoulli(ks[10], 0.5, shp4).astype(jnp.bfloat16)
    tgt4 = jnp.where(jax.random.bernoulli(ks[11], 0.25, shp4),
                     jnp.bfloat16(-1.0), tgt4)
    loss4 = jax.block_until_ready(bce_with_ignore_loss(inp4, tgt4, ignore_index=-1))
    ref4 = _reference(inp4, tgt4, ignore_index=-1)
    assert jnp.allclose(loss4, ref4, rtol=1e-5, atol=1e-5), (loss4, ref4)

    # TODO(synk): PyTorch BCELoss raises for inputs outside [0,1]; here such
    # inputs produce NaN that propagates instead (no runtime assert in Pallas).
    print("KERNEL_OK")
</pallas_src>

<mosaic_0001>
module attributes {stable_mosaic.version = 11 : i64} {
  func.func @_bce_ignore_kernel(%arg0: i32, %arg1: i32, %arg2: memref<16x128xf32, #tpu.memory_space<vmem>>, %arg3: memref<16x128xf32, #tpu.memory_space<vmem>>, %arg4: memref<1x8x128xf32, #tpu.memory_space<vmem>>, %arg5: memref<1x8x128xf32, #tpu.memory_space<vmem>>) attributes {dimension_semantics = [#tpu.dimension_semantics<parallel>, #tpu.dimension_semantics<arbitrary>], iteration_bounds = array<i64: 1, 1>, scalar_prefetch = 0 : i64, scratch_operands = 0 : i64, tpu.core_type = #tpu.core_type<tc>, window_params = [{transform_indices = @transform_0, window_bounds = array<i64: 16, 128>}, {transform_indices = @transform_1, window_bounds = array<i64: 16, 128>}, {transform_indices = @transform_2, window_bounds = array<i64: 1, 8, 128>}, {transform_indices = @transform_3, window_bounds = array<i64: 1, 8, 128>}]} {
    %c0_i32 = arith.constant 0 : i32
    %0 = arith.cmpi eq, %arg1, %c0_i32 : i32
    %1 = arith.extui %0 : i1 to i32
    %c0_i32_0 = arith.constant 0 : i32
    %2 = arith.cmpi ne, %1, %c0_i32_0 : i32
    scf.if %2 {
      %cst_22 = arith.constant 0.000000e+00 : f32
      %38 = vector.broadcast %cst_22 : f32 to vector<8x128xf32>
      %c0_23 = arith.constant 0 : index
      %c0_24 = arith.constant 0 : index
      %c0_25 = arith.constant 0 : index
      %39 = vector.load %arg4[%c0_23, %c0_24, %c0_25] : memref<1x8x128xf32, #tpu.memory_space<vmem>>, vector<1x8x128xf32>
      %40 = vector.shape_cast %39 : vector<1x8x128xf32> to vector<8x128xf32>
      %41 = vector.shape_cast %38 : vector<8x128xf32> to vector<1x8x128xf32>
      tpu.vector_store %arg4[%c0_23, %c0_24, %c0_25], %41 {strides = array<i32>} : memref<1x8x128xf32, #tpu.memory_space<vmem>>, vector<1x8x128xf32>,
      %cst_26 = arith.constant 0.000000e+00 : f32
      %42 = vector.broadcast %cst_26 : f32 to vector<8x128xf32>
      %c0_27 = arith.constant 0 : index
      %c0_28 = arith.constant 0 : index
      %c0_29 = arith.constant 0 : index
      %43 = vector.load %arg5[%c0_27, %c0_28, %c0_29] : memref<1x8x128xf32, #tpu.memory_space<vmem>>, vector<1x8x128xf32>
      %44 = vector.shape_cast %43 : vector<1x8x128xf32> to vector<8x128xf32>
      %45 = vector.shape_cast %42 : vector<8x128xf32> to vector<1x8x128xf32>
      tpu.vector_store %arg5[%c0_27, %c0_28, %c0_29], %45 {strides = array<i32>} : memref<1x8x128xf32, #tpu.memory_space<vmem>>, vector<1x8x128xf32>,
    } else {
    }
    %c0 = arith.constant 0 : index
    %c0_1 = arith.constant 0 : index
    %3 = vector.load %arg2[%c0, %c0_1] : memref<16x128xf32, #tpu.memory_space<vmem>>, vector<16x128xf32>
    %c0_2 = arith.constant 0 : index
    %c0_3 = arith.constant 0 : index
    %4 = vector.load %arg3[%c0_2, %c0_3] : memref<16x128xf32, #tpu.memory_space<vmem>>, vector<16x128xf32>
    %cst = arith.constant -1.000000e+00 : f32
    %5 = vector.broadcast %cst : f32 to vector<16x128xf32>
    %6 = arith.cmpf one, %4, %5 : vector<16x128xf32>
    %7 = math.log %3 : vector<16x128xf32>
    %cst_4 = arith.constant -1.000000e+02 : f32
    %8 = vector.broadcast %cst_4 : f32 to vector<16x128xf32>
    %9 = arith.maximumf %7, %8 : vector<16x128xf32>
    %cst_5 = arith.constant 1.000000e+00 : f32
    %10 = vector.broadcast %cst_5 : f32 to vector<16x128xf32>
    %11 = arith.subf %10, %3 : vector<16x128xf32>
    %12 = math.log %11 : vector<16x128xf32>
    %cst_6 = arith.constant -1.000000e+02 : f32
    %13 = vector.broadcast %cst_6 : f32 to vector<16x128xf32>
    %14 = arith.maximumf %12, %13 : vector<16x128xf32>
    %15 = arith.subf %9, %14 : vector<16x128xf32>
    %16 = arith.mulf %4, %15 : vector<16x128xf32>
    %17 = arith.addf %14, %16 : vector<16x128xf32>
    %cst_7 = arith.constant 0.000000e+00 : f32
    %18 = vector.broadcast %cst_7 : f32 to vector<16x128xf32>
    %19 = arith.select %6, %17, %18 : vector<16x128xi1>, vector<16x128xf32>
    %20 = arith.extui %6 : vector<16x128xi1> to vector<16x128xi32>
    %21 = arith.sitofp %20 : vector<16x128xi32> to vector<16x128xf32>
    %c0_8 = arith.constant 0 : index
    %c0_9 = arith.constant 0 : index
    %c0_10 = arith.constant 0 : index
    %22 = vector.load %arg4[%c0_8, %c0_9, %c0_10] : memref<1x8x128xf32, #tpu.memory_space<vmem>>, vector<1x8x128xf32>
    %23 = vector.shape_cast %22 : vector<1x8x128xf32> to vector<8x128xf32>
    %24 = vector.shape_cast %19 : vector<16x128xf32> to vector<2x8x128xf32>
    %cst_11 = arith.constant dense<0.000000e+00> : vector<8x128xf32>
    %25 = vector.multi_reduction <add>, %24, %cst_11 [0] : vector<2x8x128xf32> to vector<8x128xf32>
    %26 = arith.addf %23, %25 : vector<8x128xf32>
    %c0_12 = arith.constant 0 : index
    %c0_13 = arith.constant 0 : index
    %c0_14 = arith.constant 0 : index
    %27 = vector.load %arg4[%c0_12, %c0_13, %c0_14] : memref<1x8x128xf32, #tpu.memory_space<vmem>>, vector<1x8x128xf32>
    %28 = vector.shape_cast %27 : vector<1x8x128xf32> to vector<8x128xf32>
    %29 = vector.shape_cast %26 : vector<8x128xf32> to vector<1x8x128xf32>
    tpu.vector_store %arg4[%c0_12, %c0_13, %c0_14], %29 {strides = array<i32>} : memref<1x8x128xf32, #tpu.memory_space<vmem>>, vector<1x8x128xf32>,
    %c0_15 = arith.constant 0 : index
    %c0_16 = arith.constant 0 : index
    %c0_17 = arith.constant 0 : index
    %30 = vector.load %arg5[%c0_15, %c0_16, %c0_17] : memref<1x8x128xf32, #tpu.memory_space<vmem>>, vector<1x8x128xf32>
    %31 = vector.shape_cast %30 : vector<1x8x128xf32> to vector<8x128xf32>
    %32 = vector.shape_cast %21 : vector<16x128xf32> to vector<2x8x128xf32>
    %cst_18 = arith.constant dense<0.000000e+00> : vector<8x128xf32>
    %33 = vector.multi_reduction <add>, %32, %cst_18 [0] : vector<2x8x128xf32> to vector<8x128xf32>
    %34 = arith.addf %31, %33 : vector<8x128xf32>
    %c0_19 = arith.constant 0 : index
    %c0_20 = arith.constant 0 : index
    %c0_21 = arith.constant 0 : index
    %35 = vector.load %arg5[%c0_19, %c0_20, %c0_21] : memref<1x8x128xf32, #tpu.memory_space<vmem>>, vector<1x8x128xf32>
    %36 = vector.shape_cast %35 : vector<1x8x128xf32> to vector<8x128xf32>
    %37 = vector.shape_cast %34 : vector<8x128xf32> to vector<1x8x128xf32>
    tpu.vector_store %arg5[%c0_19, %c0_20, %c0_21], %37 {strides = array<i32>} : memref<1x8x128xf32, #tpu.memory_space<vmem>>, vector<1x8x128xf32>,
    return
  }
  func.func @transform_0(%arg0: i32, %arg1: i32) -> (i32, i32) {
    %c1_i32 = arith.constant 1 : i32
    %0 = arith.muli %arg0, %c1_i32 : i32
    %1 = arith.addi %0, %arg1 : i32
    %c0_i32 = arith.constant 0 : i32
    %c0_i32_0 = arith.constant 0 : i32
    return %1, %c0_i32 : i32, i32
  }
  func.func @transform_1(%arg0: i32, %arg1: i32) -> (i32, i32) {
    %c1_i32 = arith.constant 1 : i32
    %0 = arith.muli %arg0, %c1_i32 : i32
    %1 = arith.addi %0, %arg1 : i32
    %c0_i32 = arith.constant 0 : i32
    %c0_i32_0 = arith.constant 0 : i32
    return %1, %c0_i32 : i32, i32
  }
  func.func @transform_2(%arg0: i32, %arg1: i32) -> (i32, i32, i32) {
    %c0_i32 = arith.constant 0 : i32
    %c0_i32_0 = arith.constant 0 : i32
    %c0_i32_1 = arith.constant 0 : i32
    return %arg0, %c0_i32, %c0_i32_0 : i32, i32, i32
  }
  func.func @transform_3(%arg0: i32, %arg1: i32) -> (i32, i32, i32) {
    %c0_i32 = arith.constant 0 : i32
    %c0_i32_0 = arith.constant 0 : i32
    %c0_i32_1 = arith.constant 0 : i32
    return %arg0, %c0_i32, %c0_i32_0 : i32, i32, i32
  }
}

</mosaic_0001>

<llo_original>
// kernel: tpu_custom_call.1
$region0: #{tpu_custom_call.1}
  #allocation0 [shape = 'u32[]', space=smem, size = 0x4, offset = 0x4, fixed_abs, tag = 'smem constant byte address 0x4 - core index']
  #allocation1 [shape = 'u32[144,128]{1,0:T(1,128)}', space=vmem, size = 0x12000, scoped, tag = 'internal scratch']
  %s0 = inlined_call_operand.hbm [shape: f32[16,128], index: 0, kind: input, shape index: {}]
  %s1 = inlined_call_operand.hbm [shape: f32[16,128], index: 1, kind: input, shape index: {}]
  %s2 = inlined_call_operand.hbm [shape: f32[1,8,128], index: 2, kind: output, shape index: {0}]
  %s3 = inlined_call_operand.hbm [shape: f32[1,8,128], index: 3, kind: output, shape index: {1}]
  %4 = xla_tuple %s2, %s3
  %s5 = sld [smem:[#allocation0]]
  $region38: #{tpu_custom_call.1} parent=0
    _
  %s7 = ssub.s32 1, %s5
  %s8 = scalar_select 0, %s7, %s5
  $region1: #{tpu_custom_call.1} parent=0
    #allocation2 [shape = 'u8[8192]{0}', space=vmem, size = 0x2000, scoped, tag = 'input window, operand 0, single buffered']
    #allocation3 [shape = 's32[1]{0}', space=sflag, size = 0x4, scoped, tag = 'scoped memory for tpu_custom_call.1']
    #allocation4 [shape = 's32[1]{0}', space=sflag, size = 0x4, scoped, tag = 'scoped memory for tpu_custom_call.1']
    #allocation5 [shape = 'u8[8192]{0}', space=vmem, size = 0x2000, scoped, tag = 'input window, operand 1, single buffered']
    #allocation6 [shape = 's32[1]{0}', space=sflag, size = 0x4, scoped, tag = 'scoped memory for tpu_custom_call.1']
    #allocation7 [shape = 'u8[4096]{0}', space=vmem, size = 0x1000, scoped, tag = 'output window, operand 0, single buffered']
    #allocation8 [shape = 'u8[4096]{0}', space=vmem, size = 0x1000, scoped, tag = 'output window, operand 1, single buffered']
    #allocation9 [shape = 's32[1]{0}', space=sflag, size = 0x4, scoped, tag = 'scoped memory for tpu_custom_call.1']
    %9 = vsyncpa [#allocation3], 0
    %10 = vsyncpa [#allocation6], 0
    %11 = vsyncpa [#allocation4], 0
    %12 = vsyncpa [#allocation9], 0
    // Predicated region
    $region2: #{tpu_custom_call.1} parent=1 // pred_check
      _
    $region3: #{tpu_custom_call.1} parent=1 // pred_check_branch
      %14 = sbr.rel (0) target = $region5
    $region4: #{tpu_custom_call.1} parent=1 // pred_region
      %s15 = sadd.s32 0, 0
      %s16 = smul.u32 2, %s15
      %s18 = ssub.s32 256, 256
      %19 = vsyncadd [#allocation3], %s18
      %s20 = smul.addr %s16, 128
      %s21 = scalar_lea.hbm %s0, %s20
      %s22 = sshll.u32 [#allocation2], 4
      %s23 = int_to_ptr.vmem [resolvable:$true] %s22
      %28 = dma.hbm_to_vmem [thread:$0]  %s21, 256, %s23, [#allocation3], 128, 128, 8
    $region5: #{tpu_custom_call.1} parent=1 // pred_fallthru
      _
    // Predicated region
    $region6: #{tpu_custom_call.1} parent=1 // pred_check
      _
    $region7: #{tpu_custom_call.1} parent=1 // pred_check_branch
      %30 = sbr.rel (0) target = $region9
    $region8: #{tpu_custom_call.1} parent=1 // pred_region
      %s31 = sadd.s32 0, 0
      %s32 = smul.u32 2, %s31
      %s34 = ssub.s32 256, 256
      %35 = vsyncadd [#allocation6], %s34
      %s36 = smul.addr %s32, 128
      %s37 = scalar_lea.hbm %s1, %s36
      %s38 = sshll.u32 [#allocation5], 4
      %s39 = int_to_ptr.vmem [resolvable:$true] %s38
      %44 = dma.hbm_to_vmem [thread:$0]  %s37, 256, %s39, [#allocation6], 128, 128, 8
    $region9: #{tpu_custom_call.1} parent=1 // pred_fallthru
      _
    // Predicated region
    $region10: #{tpu_custom_call.1} parent=1 // pred_check
      _
    $region11: #{tpu_custom_call.1} parent=1 // pred_check_branch
      %46 = sbr.rel (0) target = $region13
    $region12: #{tpu_custom_call.1} parent=1 // pred_region
      %47 = dma.done [#allocation3], 256
    $region13: #{tpu_custom_call.1} parent=1 // pred_fallthru
      _
    // Predicated region
    $region14: #{tpu_custom_call.1} parent=1 // pred_check
      _
    $region15: #{tpu_custom_call.1} parent=1 // pred_check_branch
      %49 = sbr.rel (0) target = $region17
    $region16: #{tpu_custom_call.1} parent=1 // pred_region
      %50 = dma.done [#allocation6], 256
    $region17: #{tpu_custom_call.1} parent=1 // pred_fallthru
      _
    %s51 = sadd.s32 0, 0
    %s52 = smul.u32 2, %s51
    %s53 = sadd.s32 0, 0
    %s54 = smul.u32 2, %s53
    %p55 = scmp.eq.s32.totalorder 0, 0
    // Predicated region
    $region18: #{tpu_custom_call.1} parent=1 // pred_check
      %p56 = pneg %p55
    $region19: #{tpu_custom_call.1} parent=1 // pred_check_branch
      %58 = sbr.rel (%p56) target = $region21
    $region20: #{tpu_custom_call.1} parent=1 // pred_region
      %59 = vst [vmem:[#allocation7] sm:$0xff] 0.0
      %60 = vst [vmem:[#allocation8] sm:$0xff] 0.0
    $region21: #{tpu_custom_call.1} parent=1 // pred_fallthru
      _
    %v61 = vld [vmem:[#allocation2] sm:$0xff]
    %v62 = vld [vmem:[#allocation2 + $0x8] sm:$0xff]
    %v63 = vld [vmem:[#allocation5] sm:$0xff]
    %v64 = vld [vmem:[#allocation5 + $0x8] sm:$0xff]
    %vm65 = vcmp.ne.f32.partialorder %v63, -1.0
    %vm66 = vcmp.ne.f32.partialorder %v64, -1.0
    %v67 = vlog2.pop %v61
    %v68 = vmul.f32 %v67, 0.6931472
    %v69 = vlog2.pop %v62
    %v70 = vmul.f32 %v69, 0.6931472
    %v71 = vmax.f32 %v68, -100.0
    %v72 = vmax.f32 %v70, -100.0
    %v73 = vsub.f32 1.0, %v61
    %v74 = vsub.f32 1.0, %v62
    %v75 = vlog2.pop %v73
    %v76 = vmul.f32 %v75, 0.6931472
    %v77 = vlog2.pop %v74
    %v78 = vmul.f32 %v77, 0.6931472
    %v79 = vmax.f32 %v76, -100.0
    %v80 = vmax.f32 %v78, -100.0
    %v81 = vsub.f32 %v71, %v79
    %v82 = vsub.f32 %v72, %v80
    %v83 = vmul.f32 %v63, %v81
    %v84 = vmul.f32 %v64, %v82
    %v85 = vadd.f32 %v79, %v83
    %v86 = vadd.f32 %v80, %v84
    %v87 = vsel %vm65, %v85, 0.0
    %v88 = vsel %vm66, %v86, 0.0
    %v89 = vsel %vm65, 1, 0
    %v90 = vsel %vm66, 1, 0
    %v91 = vcvt.s32.f32 %v89
    %v92 = vcvt.s32.f32 %v90
    %v93 = vld [vmem:[#allocation7] sm:$0xff]
    %v94 = vadd.f32 %v87, %v88
    %v95 = vadd.f32 %v93, %v94
    %96 = vst [vmem:[#allocation7] sm:$0xff] %v95
    %v97 = vld [vmem:[#allocation8] sm:$0xff]
    %v98 = vadd.f32 %v91, %v92
    %v99 = vadd.f32 %v97, %v98
    %100 = vst [vmem:[#allocation8] sm:$0xff] %v99
    // Predicated region
    $region22: #{tpu_custom_call.1} parent=1 // pred_check
      _
    $region23: #{tpu_custom_call.1} parent=1 // pred_check_branch
      %102 = sbr.rel (0) target = $region25
    $region24: #{tpu_custom_call.1} parent=1 // pred_region
      %s104 = ssub.s32 128, 128
      %105 = vsyncadd [#allocation4], %s104
      %s107 = sshll.u32 [#allocation7], 4
      %s108 = int_to_ptr.vmem [resolvable:$true] %s107
      %110 = dma.vmem_to_hbm [thread:$0]  %s108, 128, %s2, [#allocation4]
    $region25: #{tpu_custom_call.1} parent=1 // pred_fallthru
      _
    // Predicated region
    $region26: #{tpu_custom_call.1} parent=1 // pred_check
      _
    $region27: #{tpu_custom_call.1} parent=1 // pred_check_branch
      %112 = sbr.rel (0) target = $region29
    $region28: #{tpu_custom_call.1} parent=1 // pred_region
      %s114 = ssub.s32 128, 128
      %115 = vsyncadd [#allocation9], %s114
      %s117 = sshll.u32 [#allocation8], 4
      %s118 = int_to_ptr.vmem [resolvable:$true] %s117
      %120 = dma.vmem_to_hbm [thread:$0]  %s118, 128, %s3, [#allocation9]
    $region29: #{tpu_custom_call.1} parent=1 // pred_fallthru
      _
    // Predicated region
    $region30: #{tpu_custom_call.1} parent=1 // pred_check
      _
    $region31: #{tpu_custom_call.1} parent=1 // pred_check_branch
      %122 = sbr.rel (0) target = $region33
    $region32: #{tpu_custom_call.1} parent=1 // pred_region
      %123 = dma.done [#allocation4], 128
    $region33: #{tpu_custom_call.1} parent=1 // pred_fallthru
      _
    // Predicated region
    $region34: #{tpu_custom_call.1} parent=1 // pred_check
      _
    $region35: #{tpu_custom_call.1} parent=1 // pred_check_branch
      %125 = sbr.rel (0) target = $region37
    $region36: #{tpu_custom_call.1} parent=1 // pred_region
      %126 = dma.done [#allocation9], 128
    $region37: #{tpu_custom_call.1} parent=1 // pred_fallthru
      _
    %127 = vsyncpa [#allocation3], 1
    %128 = vsyncpa [#allocation6], 1
    %129 = vsyncpa [#allocation4], 1
    %130 = vsyncpa [#allocation9], 1

</llo_original>
